<compile_context>
chip_gen: v7x
topology: tpu7x:2x2x1
jax: 0.10.0
libtpu: 0.0.40
codegen_flags: <defaults>
</compile_context>

<pallas_src>
import jax
import jax.numpy as jnp
from jax.experimental import pallas as pl
from jax.experimental.pallas import tpu as pltpu


def _normalize_kernel(x_ref, invw_ref, b_ref, o_ref):
    # x_ref / o_ref: (TR, TL) lane-dense tiles; invw_ref / b_ref: (TR, 1) f32
    # per-row parameters broadcast across the lane dimension.
    x = x_ref[...].astype(jnp.float32)
    o_ref[...] = ((x - b_ref[...]) * invw_ref[...]).astype(o_ref.dtype)


def _round_down_to_multiple(v, m):
    return max((v // m) * m, m)


def _default_block_bytes():
    """HBM-bandwidth-scaled per-block byte budget."""
    try:
        kind = jax.devices()[0].device_kind.lower()
    except Exception:
        kind = ""
    if "v5" in kind:          # v5e: 16 MiB scoped-VMEM default, ~0.82 TB/s
        return 2 * 1024 * 1024
    return 4 * 1024 * 1024    # v6e / v7x: bigger blocks amortize step overhead


def normalize(x, weight, bias, *, target_block_bytes=None):
    """(x - bias[c]) / weight[c] for NCHW float input x, as a Pallas TPU kernel."""
    N, C, H, W = x.shape
    HW = H * W
    rows = N * C
    dtype = x.dtype
    if not jnp.issubdtype(dtype, jnp.floating):
        raise TypeError(f"normalize expects a floating dtype, got {dtype}")
    itemsize = jnp.dtype(dtype).itemsize

    if target_block_bytes is None:
        target_block_bytes = _default_block_bytes()

    # Lane-dense 2D view: one row per (n, c) pair, H*W contiguous lanes.
    x2 = x.reshape(rows, HW)

    # Per-row parameters, precomputed once in the wrapper, kept in f32 so the
    # kernel math is exact regardless of x's dtype.
    inv_w = 1.0 / weight.astype(jnp.float32)
    b = bias.astype(jnp.float32)
    row_invw = jnp.tile(inv_w, N).reshape(rows, 1)   # row order = (n, c), c fastest
    row_b = jnp.tile(b, N).reshape(rows, 1)

    # --- Tile selection ---------------------------------------------------
    # Sublane multiple depends on dtype packing (f32: 8, bf16/f16: 16).
    sub_mult = {4: 8, 2: 16, 1: 32}.get(itemsize, 8)
    row_bytes = HW * itemsize

    # Lane (last-dim) tile: prefer the full row (one contiguous HBM burst per
    # block). Only split lanes if even a single sub_mult-row slab would blow
    # the block budget; then use near-equal 128-multiple lane blocks.
    if sub_mult * row_bytes <= target_block_bytes or HW <= 128:
        tl = HW
    else:
        max_tl = max(128, ((target_block_bytes // (sub_mult * itemsize)) // 128) * 128)
        n_lane_blocks = pl.cdiv(HW, max_tl)
        tl = ((pl.cdiv(HW, n_lane_blocks) + 127) // 128) * 128

    # Row tile: aim for ~target_block_bytes per input block.
    tr_target = max(1, target_block_bytes // (tl * itemsize))
    if rows <= max(tr_target, sub_mult):
        tr = rows                       # full dim -> always legal
    else:
        tr = _round_down_to_multiple(min(tr_target, rows), sub_mult)

    # v7x megacore balance: avoid a (1, 1) grid when there is enough work to
    # split across the two TensorCores.
    if pl.cdiv(rows, tr) == 1 and pl.cdiv(HW, tl) == 1 and rows >= 2 * sub_mult:
        tr = _round_down_to_multiple(pl.cdiv(rows, 2), sub_mult)

    grid = (pl.cdiv(rows, tr), pl.cdiv(HW, tl))  # lane axis innermost

    # VMEM budget: double-buffered in + out blocks plus (tiny) param blocks,
    # with headroom; comfortably under v7x's 64 MiB physical VMEM.
    block_bytes = tr * tl * itemsize
    vmem_limit = min(max(4 * block_bytes + 4 * 1024 * 1024, 16 * 1024 * 1024),
                     48 * 1024 * 1024)

    cost = pl.CostEstimate(
        flops=2 * rows * HW,
        transcendentals=0,
        bytes_accessed=2 * rows * HW * itemsize + 2 * rows * 4,
    )

    out2 = pl.pallas_call(
        _normalize_kernel,
        out_shape=jax.ShapeDtypeStruct((rows, HW), dtype),
        grid_spec=pltpu.PrefetchScalarGridSpec(
            num_scalar_prefetch=0,
            grid=grid,
            in_specs=[
                pl.BlockSpec((tr, tl), lambda r, l: (r, l)),
                pl.BlockSpec((tr, 1), lambda r, l: (r, 0)),
                pl.BlockSpec((tr, 1), lambda r, l: (r, 0)),
            ],
            out_specs=pl.BlockSpec((tr, tl), lambda r, l: (r, l)),
        ),
        compiler_params=pltpu.CompilerParams(
            dimension_semantics=("parallel", "parallel"),
            vmem_limit_bytes=vmem_limit,
        ),
        cost_estimate=cost,
    )(x2, row_invw, row_b)

    return out2.reshape(N, C, H, W)


if __name__ == "__main__":
    key = jax.random.PRNGKey(0)
    N, C, H, W = 2, 4, 16, 16

    x = jax.random.normal(key, (N, C, H, W), dtype=jnp.float32)

    # Deterministic parameter init matching the module's __init__ (ones/zeros),
    # perturbed slightly so the subtraction/scale is actually exercised.
    weight = jnp.ones((C,), dtype=jnp.float32) + 0.1 * jnp.arange(C, dtype=jnp.float32)
    bias = jnp.zeros((C,), dtype=jnp.float32) + 0.01 * jnp.arange(C, dtype=jnp.float32)

    out = jax.block_until_ready(normalize(x, weight, bias))

    # Reference check (plain JAX, same math as the PyTorch module).
    ref = (x - bias.reshape(1, C, 1, 1)) / weight.reshape(1, C, 1, 1)
    assert out.shape == (N, C, H, W)
    assert jnp.allclose(out, ref, atol=1e-5, rtol=1e-5), float(jnp.max(jnp.abs(out - ref)))

    print("KERNEL_OK")
</pallas_src>

<mosaic_0001>
module attributes {stable_mosaic.version = 11 : i64} {
  func.func @_normalize_kernel(%arg0: i32, %arg1: i32, %arg2: memref<8x256xf32, #tpu.memory_space<vmem>>, %arg3: memref<8x1xf32, #tpu.memory_space<vmem>>, %arg4: memref<8x1xf32, #tpu.memory_space<vmem>>, %arg5: memref<8x256xf32, #tpu.memory_space<vmem>>) attributes {dimension_semantics = [#tpu.dimension_semantics<parallel>, #tpu.dimension_semantics<parallel>], iteration_bounds = array<i64: 1, 1>, scalar_prefetch = 0 : i64, scratch_operands = 0 : i64, tpu.core_type = #tpu.core_type<tc>, window_params = [{transform_indices = @transform_0, window_bounds = array<i64: 8, 256>}, {transform_indices = @transform_1, window_bounds = array<i64: 8, 1>}, {transform_indices = @transform_2, window_bounds = array<i64: 8, 1>}, {transform_indices = @transform_3, window_bounds = array<i64: 8, 256>}]} {
    %c0 = arith.constant 0 : index
    %c0_0 = arith.constant 0 : index
    %0 = vector.load %arg2[%c0, %c0_0] : memref<8x256xf32, #tpu.memory_space<vmem>>, vector<8x256xf32>
    %c0_1 = arith.constant 0 : index
    %c0_2 = arith.constant 0 : index
    %1 = vector.load %arg4[%c0_1, %c0_2] : memref<8x1xf32, #tpu.memory_space<vmem>>, vector<8x1xf32>
    %2 = vector.broadcast %1 : vector<8x1xf32> to vector<8x256xf32>
    %3 = arith.subf %0, %2 : vector<8x256xf32>
    %c0_3 = arith.constant 0 : index
    %c0_4 = arith.constant 0 : index
    %4 = vector.load %arg3[%c0_3, %c0_4] : memref<8x1xf32, #tpu.memory_space<vmem>>, vector<8x1xf32>
    %5 = vector.broadcast %4 : vector<8x1xf32> to vector<8x256xf32>
    %6 = arith.mulf %3, %5 : vector<8x256xf32>
    %c0_5 = arith.constant 0 : index
    %c0_6 = arith.constant 0 : index
    %7 = vector.load %arg5[%c0_5, %c0_6] : memref<8x256xf32, #tpu.memory_space<vmem>>, vector<8x256xf32>
    tpu.vector_store %arg5[%c0_5, %c0_6], %6 {strides = array<i32>} : memref<8x256xf32, #tpu.memory_space<vmem>>, vector<8x256xf32>,
    return
  }
  func.func @transform_0(%arg0: i32, %arg1: i32) -> (i32, i32) {
    %c0_i32 = arith.constant 0 : i32
    return %arg0, %arg1 : i32, i32
  }
  func.func @transform_1(%arg0: i32, %arg1: i32) -> (i32, i32) {
    %c0_i32 = arith.constant 0 : i32
    %c0_i32_0 = arith.constant 0 : i32
    return %arg0, %c0_i32 : i32, i32
  }
  func.func @transform_2(%arg0: i32, %arg1: i32) -> (i32, i32) {
    %c0_i32 = arith.constant 0 : i32
    %c0_i32_0 = arith.constant 0 : i32
    return %arg0, %c0_i32 : i32, i32
  }
  func.func @transform_3(%arg0: i32, %arg1: i32) -> (i32, i32) {
    %c0_i32 = arith.constant 0 : i32
    return %arg0, %arg1 : i32, i32
  }
}

</mosaic_0001>

<llo_original>
// kernel: tpu_custom_call.1
$region0: #{tpu_custom_call.1}
  #allocation0 [shape = 'u32[]', space=smem, size = 0x4, offset = 0x4, fixed_abs, tag = 'smem constant byte address 0x4 - core index']
  #allocation1 [shape = 'u32[144,128]{1,0:T(1,128)}', space=vmem, size = 0x12000, scoped, tag = 'internal scratch']
  %s0 = inlined_call_operand.vmem [shape: f32[8,256], index: 0, kind: input, shape index: {}]
  %s1 = inlined_call_operand.vmem [shape: f32[8,1], index: 1, kind: input, shape index: {}]
  %s2 = inlined_call_operand.vmem [shape: f32[8,1], index: 2, kind: input, shape index: {}]
  %s3 = inlined_call_operand.hbm [shape: f32[8,256], index: 3, kind: output, shape index: {}]
  %s4 = sld [smem:[#allocation0]]
  $region22: #{tpu_custom_call.1} parent=0
    _
  %s6 = ssub.s32 1, %s4
  %s7 = scalar_select 0, %s6, %s4
  $region1: #{tpu_custom_call.1} parent=0
    #allocation2 [shape = 'u8[8192]{0}', space=vmem, size = 0x2000, scoped, tag = 'output window, operand 0, single buffered']
    #allocation3 [shape = 's32[1]{0}', space=sflag, size = 0x4, scoped, tag = 'scoped memory for tpu_custom_call.1']
    %8 = vsyncpa [#allocation3], 0
    // Predicated region
    $region2: #{tpu_custom_call.1} parent=1 // pred_check
      _
    $region3: #{tpu_custom_call.1} parent=1 // pred_check_branch
      %10 = sbr.rel (0) target = $region5
    $region4: #{tpu_custom_call.1} parent=1 // pred_region
      _
    $region5: #{tpu_custom_call.1} parent=1 // pred_fallthru
      _
    // Predicated region
    $region6: #{tpu_custom_call.1} parent=1 // pred_check
      _
    $region7: #{tpu_custom_call.1} parent=1 // pred_check_branch
      %12 = sbr.rel (0) target = $region9
    $region8: #{tpu_custom_call.1} parent=1 // pred_region
      _
    $region9: #{tpu_custom_call.1} parent=1 // pred_fallthru
      _
    // Predicated region
    $region10: #{tpu_custom_call.1} parent=1 // pred_check
      _
    $region11: #{tpu_custom_call.1} parent=1 // pred_check_branch
      %14 = sbr.rel (0) target = $region13
    $region12: #{tpu_custom_call.1} parent=1 // pred_region
      _
    $region13: #{tpu_custom_call.1} parent=1 // pred_fallthru
      _
    %v15 = vld [vmem:[%s0] sm:$0xff]
    %v16 = vld [vmem:[%s0 + $0x8] sm:$0xff]
    %v17 = vld [vmem:[%s2] sm:$0xff]
    %19 = vset.pattern.permute.xlu0 0
    %20 = vperm.xlu0 %19, %v17
    %v21 = vpop.permute.xlu0 %20
    %v23 = vsub.f32 %v15, %v21
    %v24 = vsub.f32 %v16, %v21
    %v25 = vld [vmem:[%s1] sm:$0xff]
    %27 = vset.pattern.permute.xlu0 0
    %28 = vperm.xlu0 %27, %v25
    %v29 = vpop.permute.xlu0 %28
    %v31 = vmul.f32 %v23, %v29
    %v32 = vmul.f32 %v24, %v29
    %33 = vst [vmem:[#allocation2] sm:$0xff] %v31
    %34 = vst [vmem:[#allocation2 + $0x8] sm:$0xff] %v32
    // Predicated region
    $region14: #{tpu_custom_call.1} parent=1 // pred_check
      _
    $region15: #{tpu_custom_call.1} parent=1 // pred_check_branch
      %36 = sbr.rel (0) target = $region17
    $region16: #{tpu_custom_call.1} parent=1 // pred_region
      %s38 = ssub.s32 256, 256
      %39 = vsyncadd [#allocation3], %s38
      %s41 = sshll.u32 [#allocation2], 4
      %s42 = int_to_ptr.vmem [resolvable:$true] %s41
      %44 = dma.vmem_to_hbm [thread:$0]  %s42, 256, %s3, [#allocation3]
    $region17: #{tpu_custom_call.1} parent=1 // pred_fallthru
      _
    // Predicated region
    $region18: #{tpu_custom_call.1} parent=1 // pred_check
      _
    $region19: #{tpu_custom_call.1} parent=1 // pred_check_branch
      %46 = sbr.rel (0) target = $region21
    $region20: #{tpu_custom_call.1} parent=1 // pred_region
      %47 = dma.done [#allocation3], 256
    $region21: #{tpu_custom_call.1} parent=1 // pred_fallthru
      _
    %48 = vsyncpa [#allocation3], 1

</llo_original>
